<compile_context>
chip_gen: v5e
topology: v5e:2x2
jax: 0.10.0
libtpu: 0.0.40
codegen_flags: <defaults>
</compile_context>

<pallas_src>
import jax
import jax.numpy as jnp
from jax.experimental import pallas as pl
from jax.experimental.pallas import tpu as pltpu

BERT_DIM = 128                       # prajjwal1/bert-tiny hidden size
SVD_DIM = 50 * 2                     # svd_components * 2
EXACT_DIM = 3
TOTAL_FEATURES = BERT_DIM + SVD_DIM + EXACT_DIM   # 231
HIDDEN = 64
NUM_CLASSES = 3

OUT_PAD = 8                          # logits padded 3 -> 8 (32 B/row written, not 512 B)
MAX_TM = 2048                        # batch-tile rows (double-buffered tiles ~4 MiB VMEM)


def _round_up(x, m):
    return (x + m - 1) // m * m


def _tile_batch(B):
    """Pick (tm, n_tiles): tiles balanced so a batch just past a tile boundary
    doesn't leave a near-empty trailing tile, and >=2 grid steps whenever B
    allows so the 'parallel' batch axis shards across v7x's two TensorCores."""
    min_tiles = 2 if B >= 16 else 1
    n_tiles = max(pl.cdiv(B, MAX_TM), min_tiles)
    tm = _round_up(pl.cdiv(B, n_tiles), 8)
    n_tiles = pl.cdiv(B, tm)
    return tm, n_tiles


def _matcher_kernel(cls_ref, svd_ref, exact_ref,
                    w1a_ref, w1b_ref, w1c_ref, b1_ref,
                    w2_ref, b2_ref, out_ref):
    # Layer 1: partial matmuls over the un-concatenated feature groups.
    h = jnp.dot(cls_ref[...], w1a_ref[...], preferred_element_type=jnp.float32)
    h = h + jnp.dot(svd_ref[...], w1b_ref[...], preferred_element_type=jnp.float32)
    # 3-wide exact-match block: VPU broadcast-FMAs (x2.0 scale folded into w1c).
    ex = exact_ref[...]
    w1c = w1c_ref[...]
    h = h + ex[:, 0:1] * w1c[0:1, :]
    h = h + ex[:, 1:2] * w1c[1:2, :]
    h = h + ex[:, 2:3] * w1c[2:3, :]
    h = jnp.maximum(h + b1_ref[...], jnp.float32(0.0))
    # Dropout(0.3): inference-mode identity.
    out_ref[...] = (jnp.dot(h, w2_ref[...], preferred_element_type=jnp.float32)
                    + b2_ref[...]).astype(out_ref.dtype)


def hybrid_matcher_forward(cls_emb, tfidf_svd_feats, exact_match_feats, kernel_params):
    """Classifier head of HybridResumeJobMatcher as a single Pallas kernel."""
    w1a, w1b, w1c, b1, w2_pad, b2_pad = kernel_params
    B = cls_emb.shape[0]
    tm, n_tiles = _tile_batch(B)

    cost = pl.CostEstimate(
        flops=2 * B * TOTAL_FEATURES * HIDDEN + 2 * B * HIDDEN * OUT_PAD,
        transcendentals=0,
        bytes_accessed=4 * (B * (TOTAL_FEATURES + OUT_PAD)
                            + w1a.size + w1b.size + w1c.size
                            + b1.size + w2_pad.size + b2_pad.size),
    )

    logits_pad = pl.pallas_call(
        _matcher_kernel,
        out_shape=jax.ShapeDtypeStruct((B, OUT_PAD), jnp.float32),
        grid=(n_tiles,),
        in_specs=[
            pl.BlockSpec((tm, BERT_DIM), lambda i: (i, 0)),      # cls_emb: tiled
            pl.BlockSpec((tm, SVD_DIM), lambda i: (i, 0)),       # svd feats: tiled
            pl.BlockSpec((tm, EXACT_DIM), lambda i: (i, 0)),     # exact feats: tiled
            pl.BlockSpec((BERT_DIM, HIDDEN), lambda i: (0, 0)),  # W1[:128]: resident
            pl.BlockSpec((SVD_DIM, HIDDEN), lambda i: (0, 0)),   # W1[128:228]: resident
            pl.BlockSpec((EXACT_DIM, HIDDEN), lambda i: (0, 0)), # W1[228:] (x2 folded)
            pl.BlockSpec((1, HIDDEN), lambda i: (0, 0)),         # b1: resident
            pl.BlockSpec((HIDDEN, OUT_PAD), lambda i: (0, 0)),   # W2 (padded to 8)
            pl.BlockSpec((1, OUT_PAD), lambda i: (0, 0)),        # b2 (padded to 8)
        ],
        out_specs=pl.BlockSpec((tm, OUT_PAD), lambda i: (i, 0)),
        compiler_params=pltpu.CompilerParams(
            dimension_semantics=("parallel",)),
        cost_estimate=cost,
    )(cls_emb, tfidf_svd_feats, exact_match_feats, w1a, w1b, w1c, b1, w2_pad, b2_pad)

    return logits_pad[:, :NUM_CLASSES]


def init_raw_params(key):
    """Deterministic init matching nn.Linear shapes: (231->64), (64->3)."""
    k1, k2, k3, k4 = jax.random.split(key, 4)
    bound1 = 1.0 / jnp.sqrt(TOTAL_FEATURES)
    bound2 = 1.0 / jnp.sqrt(HIDDEN)
    w1 = jax.random.uniform(k1, (TOTAL_FEATURES, HIDDEN), jnp.float32, -bound1, bound1)
    b1 = jax.random.uniform(k2, (1, HIDDEN), jnp.float32, -bound1, bound1)
    w2 = jax.random.uniform(k3, (HIDDEN, NUM_CLASSES), jnp.float32, -bound2, bound2)
    b2 = jax.random.uniform(k4, (1, NUM_CLASSES), jnp.float32, -bound2, bound2)
    return (w1, b1, w2, b2)


def prepare_kernel_params(raw_params):
    """Split W1 by feature group, fold the x2.0 exact-match scale, pad logits dim."""
    w1, b1, w2, b2 = raw_params
    w1a = w1[:BERT_DIM]                               # [128, 64]
    w1b = w1[BERT_DIM:BERT_DIM + SVD_DIM]             # [100, 64]
    w1c = w1[BERT_DIM + SVD_DIM:] * 2.0               # [3, 64], x2 fold (exact in f32)
    w2_pad = jnp.pad(w2, ((0, 0), (0, OUT_PAD - NUM_CLASSES)))   # [64, 8]
    b2_pad = jnp.pad(b2, ((0, 0), (0, OUT_PAD - NUM_CLASSES)))   # [1, 8]
    return (w1a, w1b, w1c, b1, w2_pad, b2_pad)


def reference_forward(cls_emb, tfidf_svd_feats, exact_match_feats, raw_params):
    """Pure-JAX replica of the PyTorch forward's tensor path (eval mode)."""
    w1, b1, w2, b2 = raw_params
    combined = jnp.concatenate(
        [cls_emb, tfidf_svd_feats, exact_match_feats * 2.0], axis=1)
    h = jnp.maximum(combined @ w1 + b1, 0.0)
    return h @ w2 + b2


if __name__ == "__main__":
    key = jax.random.PRNGKey(0)
    kp, kc, kt, ke = jax.random.split(key, 4)

    B = 8
    # Synthetic stand-ins for: BERT [CLS] embedding, TF-IDF+SVD features,
    # exact-match (jaccard/len_diff/overlap) features.
    cls_emb = jax.random.normal(kc, (B, BERT_DIM), jnp.float32)
    tfidf_svd_feats = jax.random.normal(kt, (B, SVD_DIM), jnp.float32)
    exact_match_feats = jax.random.uniform(ke, (B, EXACT_DIM), jnp.float32)

    raw_params = init_raw_params(kp)
    kernel_params = prepare_kernel_params(raw_params)

    logits = hybrid_matcher_forward(cls_emb, tfidf_svd_feats,
                                    exact_match_feats, kernel_params)
    jax.block_until_ready(logits)

    ref = reference_forward(cls_emb, tfidf_svd_feats, exact_match_feats, raw_params)
    assert logits.shape == (B, NUM_CLASSES)
    # Partial-matmul accumulation order differs slightly from the single-dot
    # reference; tolerance covers that f32 reordering.
    assert jnp.allclose(logits, ref, atol=1e-4, rtol=1e-4), "mismatch vs reference"

    print("KERNEL_OK")
</pallas_src>

<mosaic_0001>
module attributes {stable_mosaic.version = 11 : i64} {
  func.func @_matcher_kernel(%arg0: i32, %arg1: memref<8x128xf32, #tpu.memory_space<vmem>>, %arg2: memref<8x100xf32, #tpu.memory_space<vmem>>, %arg3: memref<8x3xf32, #tpu.memory_space<vmem>>, %arg4: memref<128x64xf32, #tpu.memory_space<vmem>>, %arg5: memref<100x64xf32, #tpu.memory_space<vmem>>, %arg6: memref<3x64xf32, #tpu.memory_space<vmem>>, %arg7: memref<1x64xf32, #tpu.memory_space<vmem>>, %arg8: memref<64x8xf32, #tpu.memory_space<vmem>>, %arg9: memref<1x8xf32, #tpu.memory_space<vmem>>, %arg10: memref<8x8xf32, #tpu.memory_space<vmem>>) attributes {dimension_semantics = [#tpu.dimension_semantics<parallel>], iteration_bounds = array<i64: 1>, scalar_prefetch = 0 : i64, scratch_operands = 0 : i64, tpu.core_type = #tpu.core_type<tc>, window_params = [{transform_indices = @transform_0, window_bounds = array<i64: 8, 128>}, {transform_indices = @transform_1, window_bounds = array<i64: 8, 100>}, {transform_indices = @transform_2, window_bounds = array<i64: 8, 3>}, {pipeline_mode = #tpu.pipeline_mode<synchronous>, transform_indices = @transform_3, window_bounds = array<i64: 128, 64>}, {pipeline_mode = #tpu.pipeline_mode<synchronous>, transform_indices = @transform_4, window_bounds = array<i64: 100, 64>}, {pipeline_mode = #tpu.pipeline_mode<synchronous>, transform_indices = @transform_5, window_bounds = array<i64: 3, 64>}, {pipeline_mode = #tpu.pipeline_mode<synchronous>, transform_indices = @transform_6, window_bounds = array<i64: 1, 64>}, {pipeline_mode = #tpu.pipeline_mode<synchronous>, transform_indices = @transform_7, window_bounds = array<i64: 64, 8>}, {pipeline_mode = #tpu.pipeline_mode<synchronous>, transform_indices = @transform_8, window_bounds = array<i64: 1, 8>}, {transform_indices = @transform_9, window_bounds = array<i64: 8, 8>}]} {
    %c0 = arith.constant 0 : index
    %c0_0 = arith.constant 0 : index
    %0 = vector.load %arg1[%c0, %c0_0] : memref<8x128xf32, #tpu.memory_space<vmem>>, vector<8x128xf32>
    %c0_1 = arith.constant 0 : index
    %c0_2 = arith.constant 0 : index
    %1 = vector.load %arg4[%c0_1, %c0_2] : memref<128x64xf32, #tpu.memory_space<vmem>>, vector<128x64xf32>
    %cst = arith.constant dense<0.000000e+00> : vector<8x64xf32>
    %2 = tpu.matmul %0, %1, %cst {dimension_numbers = #tpu.dot_dimension_numbers<[1], [0], [0], [1], [0, 0, 1, 1], [], []>} : vector<8x128xf32>, vector<128x64xf32>, vector<8x64xf32> -> vector<8x64xf32>
    %c0_3 = arith.constant 0 : index
    %c0_4 = arith.constant 0 : index
    %3 = vector.load %arg2[%c0_3, %c0_4] : memref<8x100xf32, #tpu.memory_space<vmem>>, vector<8x100xf32>
    %c0_5 = arith.constant 0 : index
    %c0_6 = arith.constant 0 : index
    %4 = vector.load %arg5[%c0_5, %c0_6] : memref<100x64xf32, #tpu.memory_space<vmem>>, vector<100x64xf32>
    %cst_7 = arith.constant dense<0.000000e+00> : vector<8x64xf32>
    %5 = tpu.matmul %3, %4, %cst_7 {dimension_numbers = #tpu.dot_dimension_numbers<[1], [0], [0], [1], [0, 0, 1, 1], [], []>} : vector<8x100xf32>, vector<100x64xf32>, vector<8x64xf32> -> vector<8x64xf32>
    %6 = arith.addf %2, %5 : vector<8x64xf32>
    %c0_8 = arith.constant 0 : index
    %c0_9 = arith.constant 0 : index
    %7 = vector.load %arg3[%c0_8, %c0_9] : memref<8x3xf32, #tpu.memory_space<vmem>>, vector<8x3xf32>
    %c0_10 = arith.constant 0 : index
    %c0_11 = arith.constant 0 : index
    %8 = vector.load %arg6[%c0_10, %c0_11] : memref<3x64xf32, #tpu.memory_space<vmem>>, vector<3x64xf32>
    %9 = vector.extract_strided_slice %7 {offsets = [0, 0], sizes = [8, 1], strides = [1, 1]} : vector<8x3xf32> to vector<8x1xf32>
    %10 = vector.extract_strided_slice %8 {offsets = [0, 0], sizes = [1, 64], strides = [1, 1]} : vector<3x64xf32> to vector<1x64xf32>
    %11 = vector.broadcast %9 : vector<8x1xf32> to vector<8x64xf32>
    %12 = vector.broadcast %10 : vector<1x64xf32> to vector<8x64xf32>
    %13 = arith.mulf %11, %12 : vector<8x64xf32>
    %14 = arith.addf %6, %13 : vector<8x64xf32>
    %15 = vector.extract_strided_slice %7 {offsets = [0, 1], sizes = [8, 1], strides = [1, 1]} : vector<8x3xf32> to vector<8x1xf32>
    %16 = vector.extract_strided_slice %8 {offsets = [1, 0], sizes = [1, 64], strides = [1, 1]} : vector<3x64xf32> to vector<1x64xf32>
    %17 = vector.broadcast %15 : vector<8x1xf32> to vector<8x64xf32>
    %18 = vector.broadcast %16 : vector<1x64xf32> to vector<8x64xf32>
    %19 = arith.mulf %17, %18 : vector<8x64xf32>
    %20 = arith.addf %14, %19 : vector<8x64xf32>
    %21 = vector.extract_strided_slice %7 {offsets = [0, 2], sizes = [8, 1], strides = [1, 1]} : vector<8x3xf32> to vector<8x1xf32>
    %22 = vector.extract_strided_slice %8 {offsets = [2, 0], sizes = [1, 64], strides = [1, 1]} : vector<3x64xf32> to vector<1x64xf32>
    %23 = vector.broadcast %21 : vector<8x1xf32> to vector<8x64xf32>
    %24 = vector.broadcast %22 : vector<1x64xf32> to vector<8x64xf32>
    %25 = arith.mulf %23, %24 : vector<8x64xf32>
    %26 = arith.addf %20, %25 : vector<8x64xf32>
    %c0_12 = arith.constant 0 : index
    %c0_13 = arith.constant 0 : index
    %27 = vector.load %arg7[%c0_12, %c0_13] : memref<1x64xf32, #tpu.memory_space<vmem>>, vector<1x64xf32>
    %28 = vector.broadcast %27 : vector<1x64xf32> to vector<8x64xf32>
    %29 = arith.addf %26, %28 : vector<8x64xf32>
    %cst_14 = arith.constant 0.000000e+00 : f32
    %30 = vector.broadcast %cst_14 : f32 to vector<8x64xf32>
    %31 = arith.maximumf %29, %30 : vector<8x64xf32>
    %c0_15 = arith.constant 0 : index
    %c0_16 = arith.constant 0 : index
    %32 = vector.load %arg8[%c0_15, %c0_16] : memref<64x8xf32, #tpu.memory_space<vmem>>, vector<64x8xf32>
    %cst_17 = arith.constant dense<0.000000e+00> : vector<8x8xf32>
    %33 = tpu.matmul %31, %32, %cst_17 {dimension_numbers = #tpu.dot_dimension_numbers<[1], [0], [0], [1], [0, 0, 1, 1], [], []>} : vector<8x64xf32>, vector<64x8xf32>, vector<8x8xf32> -> vector<8x8xf32>
    %c0_18 = arith.constant 0 : index
    %c0_19 = arith.constant 0 : index
    %34 = vector.load %arg9[%c0_18, %c0_19] : memref<1x8xf32, #tpu.memory_space<vmem>>, vector<1x8xf32>
    %35 = vector.broadcast %34 : vector<1x8xf32> to vector<8x8xf32>
    %36 = arith.addf %33, %35 : vector<8x8xf32>
    %c0_20 = arith.constant 0 : index
    %c0_21 = arith.constant 0 : index
    %37 = vector.load %arg10[%c0_20, %c0_21] : memref<8x8xf32, #tpu.memory_space<vmem>>, vector<8x8xf32>
    tpu.vector_store %arg10[%c0_20, %c0_21], %36 {strides = array<i32>} : memref<8x8xf32, #tpu.memory_space<vmem>>, vector<8x8xf32>,
    return
  }
  func.func @transform_0(%arg0: i32) -> (i32, i32) {
    %c0_i32 = arith.constant 0 : i32
    %c0_i32_0 = arith.constant 0 : i32
    return %arg0, %c0_i32 : i32, i32
  }
  func.func @transform_1(%arg0: i32) -> (i32, i32) {
    %c0_i32 = arith.constant 0 : i32
    %c0_i32_0 = arith.constant 0 : i32
    return %arg0, %c0_i32 : i32, i32
  }
  func.func @transform_2(%arg0: i32) -> (i32, i32) {
    %c0_i32 = arith.constant 0 : i32
    %c0_i32_0 = arith.constant 0 : i32
    return %arg0, %c0_i32 : i32, i32
  }
  func.func @transform_3(%arg0: i32) -> (i32, i32) {
    %c0_i32 = arith.constant 0 : i32
    %c0_i32_0 = arith.constant 0 : i32
    %c0_i32_1 = arith.constant 0 : i32
    return %c0_i32, %c0_i32_0 : i32, i32
  }
  func.func @transform_4(%arg0: i32) -> (i32, i32) {
    %c0_i32 = arith.constant 0 : i32
    %c0_i32_0 = arith.constant 0 : i32
    %c0_i32_1 = arith.constant 0 : i32
    return %c0_i32, %c0_i32_0 : i32, i32
  }
  func.func @transform_5(%arg0: i32) -> (i32, i32) {
    %c0_i32 = arith.constant 0 : i32
    %c0_i32_0 = arith.constant 0 : i32
    %c0_i32_1 = arith.constant 0 : i32
    return %c0_i32, %c0_i32_0 : i32, i32
  }
  func.func @transform_6(%arg0: i32) -> (i32, i32) {
    %c0_i32 = arith.constant 0 : i32
    %c0_i32_0 = arith.constant 0 : i32
    %c0_i32_1 = arith.constant 0 : i32
    return %c0_i32, %c0_i32_0 : i32, i32
  }
  func.func @transform_7(%arg0: i32) -> (i32, i32) {
    %c0_i32 = arith.constant 0 : i32
    %c0_i32_0 = arith.constant 0 : i32
    %c0_i32_1 = arith.constant 0 : i32
    return %c0_i32, %c0_i32_0 : i32, i32
  }
  func.func @transform_8(%arg0: i32) -> (i32, i32) {
    %c0_i32 = arith.constant 0 : i32
    %c0_i32_0 = arith.constant 0 : i32
    %c0_i32_1 = arith.constant 0 : i32
    return %c0_i32, %c0_i32_0 : i32, i32
  }
  func.func @transform_9(%arg0: i32) -> (i32, i32) {
    %c0_i32 = arith.constant 0 : i32
    %c0_i32_0 = arith.constant 0 : i32
    return %arg0, %c0_i32 : i32, i32
  }
}

</mosaic_0001>

<llo_original>
// kernel: tpu_custom_call.1
$region0: #{tpu_custom_call.1}
  #allocation0 [shape = 'u32[]', space=smem, size = 0x4, offset = 0x4, fixed_abs, tag = 'smem constant byte address 0x4 - core index']
  #allocation1 [shape = 'u32[72,128]{1,0:T(1,128)}', space=vmem, size = 0x9000, scoped, tag = 'internal scratch']
  %s0 = inlined_call_operand.vmem [shape: f32[8,128], index: 0, kind: input, shape index: {}]
  %s1 = inlined_call_operand.vmem [shape: f32[8,100], index: 1, kind: input, shape index: {}]
  %s2 = inlined_call_operand.vmem [shape: f32[8,3], index: 2, kind: input, shape index: {}]
  %s3 = inlined_call_operand.vmem [shape: f32[128,64], index: 3, kind: input, shape index: {}]
  %s4 = inlined_call_operand.vmem [shape: f32[100,64], index: 4, kind: input, shape index: {}]
  %s5 = inlined_call_operand.vmem [shape: f32[3,64], index: 5, kind: input, shape index: {}]
  %s6 = inlined_call_operand.vmem [shape: f32[1,64], index: 6, kind: input, shape index: {}]
  %s7 = inlined_call_operand.vmem [shape: f32[64,8], index: 7, kind: input, shape index: {}]
  %s8 = inlined_call_operand.vmem [shape: f32[1,8], index: 8, kind: input, shape index: {}]
  %s9 = inlined_call_operand.hbm [shape: f32[8,8], index: 9, kind: output, shape index: {}]
  %s10 = sld [smem:[#allocation0]]
  $region46: #{tpu_custom_call.1} parent=0
    _
  %s12 = ssub.s32 1, %s10
  %s13 = scalar_select 0, %s12, %s10
  $region1: #{tpu_custom_call.1} parent=0
    #allocation2 [shape = 'u8[4096]{0}', space=vmem, size = 0x1000, scoped, tag = 'output window, operand 0, single buffered']
    #allocation3 [shape = 's32[1]{0}', space=sflag, size = 0x4, scoped, tag = 'scoped memory for tpu_custom_call.1']
    %14 = vsyncpa [#allocation3], 0
    // Predicated region
    $region2: #{tpu_custom_call.1} parent=1 // pred_check
      _
    $region3: #{tpu_custom_call.1} parent=1 // pred_check_branch
      %16 = sbr.rel (0) target = $region5
    $region4: #{tpu_custom_call.1} parent=1 // pred_region
      _
    $region5: #{tpu_custom_call.1} parent=1 // pred_fallthru
      _
    // Predicated region
    $region6: #{tpu_custom_call.1} parent=1 // pred_check
      _
    $region7: #{tpu_custom_call.1} parent=1 // pred_check_branch
      %18 = sbr.rel (0) target = $region9
    $region8: #{tpu_custom_call.1} parent=1 // pred_region
      _
    $region9: #{tpu_custom_call.1} parent=1 // pred_fallthru
      _
    // Predicated region
    $region10: #{tpu_custom_call.1} parent=1 // pred_check
      _
    $region11: #{tpu_custom_call.1} parent=1 // pred_check_branch
      %20 = sbr.rel (0) target = $region13
    $region12: #{tpu_custom_call.1} parent=1 // pred_region
      _
    $region13: #{tpu_custom_call.1} parent=1 // pred_fallthru
      _
    // Predicated region
    $region14: #{tpu_custom_call.1} parent=1 // pred_check
      _
    $region15: #{tpu_custom_call.1} parent=1 // pred_check_branch
      %22 = sbr.rel (0) target = $region17
    $region16: #{tpu_custom_call.1} parent=1 // pred_region
      _
    $region17: #{tpu_custom_call.1} parent=1 // pred_fallthru
      _
    // Predicated region
    $region18: #{tpu_custom_call.1} parent=1 // pred_check
      _
    $region19: #{tpu_custom_call.1} parent=1 // pred_check_branch
      %24 = sbr.rel (0) target = $region21
    $region20: #{tpu_custom_call.1} parent=1 // pred_region
      _
    $region21: #{tpu_custom_call.1} parent=1 // pred_fallthru
      _
    // Predicated region
    $region22: #{tpu_custom_call.1} parent=1 // pred_check
      _
    $region23: #{tpu_custom_call.1} parent=1 // pred_check_branch
      %26 = sbr.rel (0) target = $region25
    $region24: #{tpu_custom_call.1} parent=1 // pred_region
      _
    $region25: #{tpu_custom_call.1} parent=1 // pred_fallthru
      _
    // Predicated region
    $region26: #{tpu_custom_call.1} parent=1 // pred_check
      _
    $region27: #{tpu_custom_call.1} parent=1 // pred_check_branch
      %28 = sbr.rel (0) target = $region29
    $region28: #{tpu_custom_call.1} parent=1 // pred_region
      _
    $region29: #{tpu_custom_call.1} parent=1 // pred_fallthru
      _
    // Predicated region
    $region30: #{tpu_custom_call.1} parent=1 // pred_check
      _
    $region31: #{tpu_custom_call.1} parent=1 // pred_check_branch
      %30 = sbr.rel (0) target = $region33
    $region32: #{tpu_custom_call.1} parent=1 // pred_region
      _
    $region33: #{tpu_custom_call.1} parent=1 // pred_fallthru
      _
    // Predicated region
    $region34: #{tpu_custom_call.1} parent=1 // pred_check
      _
    $region35: #{tpu_custom_call.1} parent=1 // pred_check_branch
      %32 = sbr.rel (0) target = $region37
    $region36: #{tpu_custom_call.1} parent=1 // pred_region
      _
    $region37: #{tpu_custom_call.1} parent=1 // pred_fallthru
      _
    %v33 = vld [vmem:[%s0] sm:$0xff]
    %v34 = vld [vmem:[%s3] sm:$0xff]
    %v35 = vld [vmem:[%s3 + $0x8] sm:$0xff]
    %v36 = vld [vmem:[%s3 + $0x10] sm:$0xff]
    %v37 = vld [vmem:[%s3 + $0x18] sm:$0xff]
    %v38 = vld [vmem:[%s3 + $0x20] sm:$0xff]
    %v39 = vld [vmem:[%s3 + $0x28] sm:$0xff]
    %v40 = vld [vmem:[%s3 + $0x30] sm:$0xff]
    %v41 = vld [vmem:[%s3 + $0x38] sm:$0xff]
    %v42 = vld [vmem:[%s3 + $0x40] sm:$0xff]
    %v43 = vld [vmem:[%s3 + $0x48] sm:$0xff]
    %v44 = vld [vmem:[%s3 + $0x50] sm:$0xff]
    %v45 = vld [vmem:[%s3 + $0x58] sm:$0xff]
    %v46 = vld [vmem:[%s3 + $0x60] sm:$0xff]
    %v47 = vld [vmem:[%s3 + $0x68] sm:$0xff]
    %v48 = vld [vmem:[%s3 + $0x70] sm:$0xff]
    %v49 = vld [vmem:[%s3 + $0x78] sm:$0xff]
    %v50 = vld [vmem:[%s1] sm:$0xff]
    %v51 = vld [vmem:[%s4] sm:$0xff]
    %v52 = vld [vmem:[%s4 + $0x8] sm:$0xff]
    %v53 = vld [vmem:[%s4 + $0x10] sm:$0xff]
    %v54 = vld [vmem:[%s4 + $0x18] sm:$0xff]
    %v55 = vld [vmem:[%s4 + $0x20] sm:$0xff]
    %v56 = vld [vmem:[%s4 + $0x28] sm:$0xff]
    %v57 = vld [vmem:[%s4 + $0x30] sm:$0xff]
    %v58 = vld [vmem:[%s4 + $0x38] sm:$0xff]
    %v59 = vld [vmem:[%s4 + $0x40] sm:$0xff]
    %v60 = vld [vmem:[%s4 + $0x48] sm:$0xff]
    %v61 = vld [vmem:[%s4 + $0x50] sm:$0xff]
    %v62 = vld [vmem:[%s4 + $0x58] sm:$0xff]
    %v63 = vld [vmem:[%s4 + $0x60] sm:$0xf]
    %vm64 = vcmask 818176
    %v66 = vsel %vm64, %v50, 0
    %vm68 = vcmask 1043456
    %v70 = vsel %vm68, %v63, 0
    %72 = vmatpush.msra.mxu0 0.0
    %73 = vmatpush.msra.mxu0 0.0
    %74 = vmatpush.msra.mxu0 0.0
    %75 = vmatpush.msra.mxu0 %v70
    %76 = vmatpush.msra.mxu0 %v62
    %77 = vmatpush.msra.mxu0 %v61
    %78 = vmatpush.msra.mxu0 %v60
    %79 = vmatpush.msra.mxu0 %v59
    %80 = vmatpush.msra.mxu0 %v58
    %81 = vmatpush.msra.mxu0 %v57
    %82 = vmatpush.msra.mxu0 %v56
    %83 = vmatpush.msra.mxu0 %v55
    %84 = vmatpush.msra.mxu0 %v54
    %85 = vmatpush.msra.mxu0 %v53
    %86 = vmatpush.msra.mxu0 %v52
    %87 = vmatpush.msra.mxu0 %v51
    %88 = vmatmul.f32.gmra.mxu0 %v66
    %v89 = vpop.f32.mrf.mxu0
    %v90 = vadd.f32 0.0, %v89
    %91 = vdwg.mxu0
    %92 = vmatpush.msra.mxu0 %v49
    %93 = vmatpush.msra.mxu0 %v48
    %94 = vmatpush.msra.mxu0 %v47
    %95 = vmatpush.msra.mxu0 %v46
    %96 = vmatpush.msra.mxu0 %v45
    %97 = vmatpush.msra.mxu0 %v44
    %98 = vmatpush.msra.mxu0 %v43
    %99 = vmatpush.msra.mxu0 %v42
    %100 = vmatpush.msra.mxu0 %v41
    %101 = vmatpush.msra.mxu0 %v40
    %102 = vmatpush.msra.mxu0 %v39
    %103 = vmatpush.msra.mxu0 %v38
    %104 = vmatpush.msra.mxu0 %v37
    %105 = vmatpush.msra.mxu0 %v36
    %106 = vmatpush.msra.mxu0 %v35
    %107 = vmatpush.msra.mxu0 %v34
    %108 = vmatmul.f32.gmra.mxu0 %v33
    %v109 = vpop.f32.mrf.mxu0
    %v110 = vadd.f32 %v90, %v109
    %111 = vdwg.mxu0
    %v112 = vld [vmem:[%s2] sm:$0xff]
    %v113 = vld [vmem:[%s5] sm:$0x7]
    %115 = vset.pattern.permute.xlu0 0
    %116 = vperm.xlu0 %115, %v112
    %v117 = vpop.permute.xlu0 %116
    %v119 = vperm.slane %v113, 0
    %v120 = vmul.f32 %v117, %v119
    %v121 = vadd.f32 %v110, %v120
    %122 = vset.pattern.permute.xlu0 1
    %123 = vperm.xlu0 %122, %v112
    %v124 = vpop.permute.xlu0 %123
    %v126 = vperm.slane %v113, 1
    %v127 = vmul.f32 %v124, %v126
    %v128 = vadd.f32 %v121, %v127
    %129 = vset.pattern.permute.xlu0 2
    %130 = vperm.xlu0 %129, %v112
    %v131 = vpop.permute.xlu0 %130
    %v133 = vperm.slane %v113, 2
    %v134 = vmul.f32 %v131, %v133
    %v135 = vadd.f32 %v128, %v134
    %v136 = vld [vmem:[%s6] sm:$0x1]
    %v138 = vperm.slane %v136, 0
    %v140 = vadd.f32 %v135, %v138
    %v141 = vmax.f32 %v140, 0.0
    %v142 = vld [vmem:[%s7] sm:$0xff]
    %v143 = vld [vmem:[%s7 + $0x8] sm:$0xff]
    %v144 = vld [vmem:[%s7 + $0x10] sm:$0xff]
    %v145 = vld [vmem:[%s7 + $0x18] sm:$0xff]
    %v146 = vld [vmem:[%s7 + $0x20] sm:$0xff]
    %v147 = vld [vmem:[%s7 + $0x28] sm:$0xff]
    %v148 = vld [vmem:[%s7 + $0x30] sm:$0xff]
    %v149 = vld [vmem:[%s7 + $0x38] sm:$0xff]
    %v150 = vld [vmem:[%s8] sm:$0x1]
    %v152 = vperm.slane %v150, 0
    %vm154 = vcmask 523264
    %v156 = vsel %vm154, %v141, 0
    %158 = vmatpush.msra.mxu0 0.0
    %159 = vmatpush.msra.mxu0 0.0
    %160 = vmatpush.msra.mxu0 0.0
    %161 = vmatpush.msra.mxu0 0.0
    %162 = vmatpush.msra.mxu0 0.0
    %163 = vmatpush.msra.mxu0 0.0
    %164 = vmatpush.msra.mxu0 0.0
    %165 = vmatpush.msra.mxu0 0.0
    %166 = vmatpush.msra.mxu0 %v149
    %167 = vmatpush.msra.mxu0 %v148
    %168 = vmatpush.msra.mxu0 %v147
    %169 = vmatpush.msra.mxu0 %v146
    %170 = vmatpush.msra.mxu0 %v145
    %171 = vmatpush.msra.mxu0 %v144
    %172 = vmatpush.msra.mxu0 %v143
    %173 = vmatpush.msra.mxu0 %v142
    %174 = vmatmul.f32.gmra.mxu0 %v156
    %v175 = vpop.f32.mrf.mxu0
    %v176 = vadd.f32 %v152, %v175
    %177 = vdwg.mxu0
    %vm178 = vcmask 64512
    %179 = vst.msk [vmem:[#allocation2] sm:$0xff] %vm178, %v176
    // Predicated region
    $region38: #{tpu_custom_call.1} parent=1 // pred_check
      _
    $region39: #{tpu_custom_call.1} parent=1 // pred_check_branch
      %181 = sbr.rel (0) target = $region41
    $region40: #{tpu_custom_call.1} parent=1 // pred_region
      %183 = vsyncadd [#allocation3], 0
      %s185 = sshll.u32 [#allocation2], 4
      %s186 = int_to_ptr.vmem [resolvable:$true] %s185
      %s187 = sshll.u32 %s9, 4
      %s188 = int_to_ptr.hbm [resolvable:$true] %s187
      %190 = dma.vmem_to_hbm [thread:$0]  %s186, 128, %s188, [#allocation3]
    $region41: #{tpu_custom_call.1} parent=1 // pred_fallthru
      _
    // Predicated region
    $region42: #{tpu_custom_call.1} parent=1 // pred_check
      _
    $region43: #{tpu_custom_call.1} parent=1 // pred_check_branch
      %192 = sbr.rel (0) target = $region45
    $region44: #{tpu_custom_call.1} parent=1 // pred_region
      %194 = dma.done [#allocation3], 128
    $region45: #{tpu_custom_call.1} parent=1 // pred_fallthru
      _
    %195 = vsyncpa [#allocation3], 1

</llo_original>
